<compile_context>
chip_gen: v6e
topology: v6e:2x2x1
jax: 0.10.0
libtpu: 0.0.40
codegen_flags: <defaults>
</compile_context>

<pallas_src>
import functools

import jax
import jax.numpy as jnp
from jax.experimental import pallas as pl
from jax.experimental.pallas import tpu as pltpu

_LANES = 128
_TARGET_BLOCK_BYTES = 2 * 1024 * 1024   # ~2 MiB DMA block per input
_MAX_TILE_ROWS_CAP = 8192               # bounds f32 intermediates to ~4 MiB
_VMEM_LIMIT_BYTES = 40 * 1024 * 1024    # < 64 MiB (v7x phys), << 128 MiB (v5e/v6e)


def _round_up(x, m):
    return ((x + m - 1) // m) * m


def _sublane_multiple(dtype):
    # Sublane tile multiple: 8 for 4-byte, 16 for 2-byte, 32 for 1-byte dtypes.
    return max(8, 32 // jnp.dtype(dtype).itemsize)


def _num_tensorcores():
    # Best-effort detection of TensorCores per chip (2 on v7x, 1 on v5e/v6e).
    # Defaults to 1 if unknown, which is correct on v5e/v6e and merely skips
    # the dual-core split on v7x.
    # TODO(synk): on v7x, verify the size-2 "parallel" axis actually shards
    # across both TensorCores; if not, switch to pltpu.CORE_PARALLEL /
    # pl.core_map with pltpu.create_tensorcore_mesh.
    try:
        info = pltpu.get_tpu_info()
    except Exception:
        return 1
    for attr in ("num_cores", "core_count", "num_tensorcores",
                 "tensorcore_count", "cores_per_chip"):
        v = getattr(info, attr, None)
        if isinstance(v, int) and v > 0:
            return v
    return 1


def _rmse_partial_kernel(yhat_ref, y_ref, out_ref, *,
                         n_rows, tile_rows, steps_per_core, has_core_axis):
    if has_core_axis:
        c = pl.program_id(0)       # core split
        i = pl.program_id(1)       # row-tile step within this core's range
        b = c * steps_per_core + i
    else:
        i = pl.program_id(0)
        b = i

    @pl.when(i == 0)
    def _():
        out_ref[...] = jnp.zeros_like(out_ref)

    # Cast per-tile inside the kernel (VPU; avoids full-size f32 HBM copies
    # for sub-32-bit inputs).
    d = yhat_ref[...].astype(jnp.float32) - y_ref[...].astype(jnp.float32)
    sq = d * d

    tile_start = b * tile_rows
    needs_mask = tile_start + tile_rows > n_rows

    # Fast path: interior tiles, no mask cost.
    @pl.when(jnp.logical_not(needs_mask))
    def _():
        # vreg-shaped accumulation: (tile_rows,128)->(tile_rows//8,8,128),
        # reduced over the leading axis with plain vector adds. The expensive
        # cross-lane/sublane reduce happens once, outside the kernel.
        out_ref[...] += jnp.sum(sq.reshape(tile_rows // 8, 8, _LANES), axis=0)

    # Boundary path: partial last tile / clamped extra tiles get masked.
    @pl.when(needs_mask)
    def _():
        row = jax.lax.broadcasted_iota(jnp.int32, (tile_rows, _LANES), 0)
        global_row = tile_start + row
        sq_m = jnp.where(global_row < n_rows, sq, 0.0)  # select, not multiply
        out_ref[...] += jnp.sum(sq_m.reshape(tile_rows // 8, 8, _LANES), axis=0)


def _rmse_partial_sums(yhat2d, y2d, n_rows, tile_rows):
    total_blocks = pl.cdiv(n_rows, tile_rows)
    num_splits = max(1, min(_num_tensorcores(), 2, total_blocks))

    if num_splits > 1:
        steps_per_core = pl.cdiv(total_blocks, num_splits)
        max_block = total_blocks - 1

        def in_map(c, i):
            # Clamp so tiles past the end of the array (possible on the second
            # core split) re-read the last block; they are masked in-kernel.
            return (jnp.minimum(c * steps_per_core + i, max_block), 0)

        out_map = lambda c, i: (c, 0, 0)
        grid = (num_splits, steps_per_core)
        semantics = ("parallel", "arbitrary")
    else:
        steps_per_core = total_blocks
        in_map = lambda i: (i, 0)
        out_map = lambda i: (0, 0, 0)
        grid = (total_blocks,)
        semantics = ("arbitrary",)

    kernel = functools.partial(
        _rmse_partial_kernel,
        n_rows=n_rows, tile_rows=tile_rows,
        steps_per_core=steps_per_core, has_core_axis=(num_splits > 1))

    return pl.pallas_call(
        kernel,
        out_shape=jax.ShapeDtypeStruct((num_splits, 8, _LANES), jnp.float32),
        grid_spec=pltpu.PrefetchScalarGridSpec(
            num_scalar_prefetch=0,
            grid=grid,
            in_specs=[
                pl.BlockSpec((tile_rows, _LANES), in_map),
                pl.BlockSpec((tile_rows, _LANES), in_map),
            ],
            out_specs=pl.BlockSpec((None, 8, _LANES), out_map),
        ),
        compiler_params=pltpu.CompilerParams(
            dimension_semantics=semantics,
            vmem_limit_bytes=_VMEM_LIMIT_BYTES),
    )(yhat2d, y2d)


def rmse_loss(yhat, y, eps=1e-6):
    """sqrt(mean((yhat - y)**2) + eps), matching torch RMSELoss.forward."""
    assert yhat.shape == y.shape, "yhat and y must have the same shape"
    n_elems = yhat.size
    assert n_elems > 0

    flat_yhat = yhat.reshape(-1)
    flat_y = y.reshape(-1)

    n_main = (n_elems // _LANES) * _LANES   # largest multiple of 128
    tail = n_elems - n_main                 # <= 127 leftover elements

    total_sq = jnp.float32(0.0)

    if n_main > 0:
        # No jnp.pad: common path (multiple of 128) is a free reshape; the
        # rare non-multiple path slices off the main slab only.
        main_yhat = flat_yhat[:n_main] if tail else flat_yhat
        main_y = flat_y[:n_main] if tail else flat_y
        n_rows = n_main // _LANES

        item = max(jnp.dtype(yhat.dtype).itemsize, jnp.dtype(y.dtype).itemsize)
        sub = max(_sublane_multiple(yhat.dtype), _sublane_multiple(y.dtype))
        max_tile_rows = min(_MAX_TILE_ROWS_CAP,
                            _TARGET_BLOCK_BYTES // (_LANES * item))
        max_tile_rows = _round_up(max_tile_rows, sub)
        tile_rows = min(max_tile_rows, _round_up(n_rows, sub))

        partials = _rmse_partial_sums(
            main_yhat.reshape(n_rows, _LANES),
            main_y.reshape(n_rows, _LANES),
            n_rows, tile_rows)
        # Single tiny cross-lane reduce on the (num_splits, 8, 128) partials.
        total_sq = total_sq + jnp.sum(partials)

    if tail:
        # <=127 elements: squared sum in plain JAX (cheaper than any padding).
        dt = (flat_yhat[n_main:].astype(jnp.float32)
              - flat_y[n_main:].astype(jnp.float32))
        total_sq = total_sq + jnp.sum(dt * dt)

    mse = total_sq / jnp.float32(n_elems)
    return jnp.sqrt(mse + jnp.float32(eps))


if __name__ == "__main__":
    key = jax.random.PRNGKey(0)
    k1, k2 = jax.random.split(key)
    # Small shapes consistent with a typical regression target tensor.
    yhat = jax.random.normal(k1, (2, 4, 16, 16), dtype=jnp.float32)
    y = jax.random.normal(k2, (2, 4, 16, 16), dtype=jnp.float32)

    loss = rmse_loss(yhat, y)
    jax.block_until_ready(loss)

    # Reference check in plain JAX.
    ref = jnp.sqrt(jnp.mean((yhat - y) ** 2) + 1e-6)
    assert jnp.allclose(loss, ref, rtol=1e-5, atol=1e-6), (loss, ref)

    print("KERNEL_OK")
</pallas_src>

<mosaic_0001>
module attributes {stable_mosaic.version = 11 : i64} {
  func.func @_rmse_partial_kernel(%arg0: i32, %arg1: memref<16x128xf32, #tpu.memory_space<vmem>>, %arg2: memref<16x128xf32, #tpu.memory_space<vmem>>, %arg3: memref<1x8x128xf32, #tpu.memory_space<vmem>>) attributes {dimension_semantics = [#tpu.dimension_semantics<arbitrary>], iteration_bounds = array<i64: 1>, scalar_prefetch = 0 : i64, scratch_operands = 0 : i64, tpu.core_type = #tpu.core_type<tc>, window_params = [{transform_indices = @transform_0, window_bounds = array<i64: 16, 128>}, {transform_indices = @transform_1, window_bounds = array<i64: 16, 128>}, {pipeline_mode = #tpu.pipeline_mode<synchronous>, transform_indices = @transform_2, window_bounds = array<i64: 1, 8, 128>}]} {
    %c0_i32 = arith.constant 0 : i32
    %0 = arith.cmpi eq, %arg0, %c0_i32 : i32
    %1 = arith.extui %0 : i1 to i32
    %c0_i32_0 = arith.constant 0 : i32
    %2 = arith.cmpi ne, %1, %c0_i32_0 : i32
    scf.if %2 {
      %cst = arith.constant 0.000000e+00 : f32
      %15 = vector.broadcast %cst : f32 to vector<8x128xf32>
      %c0_8 = arith.constant 0 : index
      %c0_9 = arith.constant 0 : index
      %c0_10 = arith.constant 0 : index
      %16 = vector.load %arg3[%c0_8, %c0_9, %c0_10] : memref<1x8x128xf32, #tpu.memory_space<vmem>>, vector<1x8x128xf32>
      %17 = vector.shape_cast %16 : vector<1x8x128xf32> to vector<8x128xf32>
      %18 = vector.shape_cast %15 : vector<8x128xf32> to vector<1x8x128xf32>
      tpu.vector_store %arg3[%c0_8, %c0_9, %c0_10], %18 {strides = array<i32>} : memref<1x8x128xf32, #tpu.memory_space<vmem>>, vector<1x8x128xf32>,
    } else {
    }
    %c0 = arith.constant 0 : index
    %c0_1 = arith.constant 0 : index
    %3 = vector.load %arg1[%c0, %c0_1] : memref<16x128xf32, #tpu.memory_space<vmem>>, vector<16x128xf32>
    %c0_2 = arith.constant 0 : index
    %c0_3 = arith.constant 0 : index
    %4 = vector.load %arg2[%c0_2, %c0_3] : memref<16x128xf32, #tpu.memory_space<vmem>>, vector<16x128xf32>
    %5 = arith.subf %3, %4 : vector<16x128xf32>
    %6 = arith.mulf %5, %5 : vector<16x128xf32>
    %c16_i32 = arith.constant 16 : i32
    %7 = arith.muli %arg0, %c16_i32 : i32
    %c16_i32_4 = arith.constant 16 : i32
    %8 = arith.addi %7, %c16_i32_4 : i32
    %c16_i32_5 = arith.constant 16 : i32
    %9 = arith.cmpi sgt, %8, %c16_i32_5 : i32
    %true = arith.constant true
    %10 = arith.xori %9, %true : i1
    %11 = arith.extui %10 : i1 to i32
    %c0_i32_6 = arith.constant 0 : i32
    %12 = arith.cmpi ne, %11, %c0_i32_6 : i32
    scf.if %12 {
      %c0_8 = arith.constant 0 : index
      %c0_9 = arith.constant 0 : index
      %c0_10 = arith.constant 0 : index
      %15 = vector.load %arg3[%c0_8, %c0_9, %c0_10] : memref<1x8x128xf32, #tpu.memory_space<vmem>>, vector<1x8x128xf32>
      %16 = vector.shape_cast %15 : vector<1x8x128xf32> to vector<8x128xf32>
      %17 = vector.shape_cast %6 : vector<16x128xf32> to vector<2x8x128xf32>
      %cst = arith.constant dense<0.000000e+00> : vector<8x128xf32>
      %18 = vector.multi_reduction <add>, %17, %cst [0] : vector<2x8x128xf32> to vector<8x128xf32>
      %19 = arith.addf %16, %18 : vector<8x128xf32>
      %c0_11 = arith.constant 0 : index
      %c0_12 = arith.constant 0 : index
      %c0_13 = arith.constant 0 : index
      %20 = vector.load %arg3[%c0_11, %c0_12, %c0_13] : memref<1x8x128xf32, #tpu.memory_space<vmem>>, vector<1x8x128xf32>
      %21 = vector.shape_cast %20 : vector<1x8x128xf32> to vector<8x128xf32>
      %22 = vector.shape_cast %19 : vector<8x128xf32> to vector<1x8x128xf32>
      tpu.vector_store %arg3[%c0_11, %c0_12, %c0_13], %22 {strides = array<i32>} : memref<1x8x128xf32, #tpu.memory_space<vmem>>, vector<1x8x128xf32>,
    } else {
    }
    %13 = arith.extui %9 : i1 to i32
    %c0_i32_7 = arith.constant 0 : i32
    %14 = arith.cmpi ne, %13, %c0_i32_7 : i32
    scf.if %14 {
      %15 = tpu.iota {dimensions = array<i32: 0>} : vector<16x128xi32>
      %16 = vector.broadcast %7 : i32 to vector<16x128xi32>
      %17 = arith.addi %16, %15 : vector<16x128xi32>
      %c16_i32_8 = arith.constant 16 : i32
      %18 = vector.broadcast %c16_i32_8 : i32 to vector<16x128xi32>
      %19 = arith.cmpi slt, %17, %18 : vector<16x128xi32>
      %cst = arith.constant 0.000000e+00 : f32
      %20 = vector.broadcast %cst : f32 to vector<16x128xf32>
      %21 = arith.select %19, %6, %20 : vector<16x128xi1>, vector<16x128xf32>
      %c0_9 = arith.constant 0 : index
      %c0_10 = arith.constant 0 : index
      %c0_11 = arith.constant 0 : index
      %22 = vector.load %arg3[%c0_9, %c0_10, %c0_11] : memref<1x8x128xf32, #tpu.memory_space<vmem>>, vector<1x8x128xf32>
      %23 = vector.shape_cast %22 : vector<1x8x128xf32> to vector<8x128xf32>
      %24 = vector.shape_cast %21 : vector<16x128xf32> to vector<2x8x128xf32>
      %cst_12 = arith.constant dense<0.000000e+00> : vector<8x128xf32>
      %25 = vector.multi_reduction <add>, %24, %cst_12 [0] : vector<2x8x128xf32> to vector<8x128xf32>
      %26 = arith.addf %23, %25 : vector<8x128xf32>
      %c0_13 = arith.constant 0 : index
      %c0_14 = arith.constant 0 : index
      %c0_15 = arith.constant 0 : index
      %27 = vector.load %arg3[%c0_13, %c0_14, %c0_15] : memref<1x8x128xf32, #tpu.memory_space<vmem>>, vector<1x8x128xf32>
      %28 = vector.shape_cast %27 : vector<1x8x128xf32> to vector<8x128xf32>
      %29 = vector.shape_cast %26 : vector<8x128xf32> to vector<1x8x128xf32>
      tpu.vector_store %arg3[%c0_13, %c0_14, %c0_15], %29 {strides = array<i32>} : memref<1x8x128xf32, #tpu.memory_space<vmem>>, vector<1x8x128xf32>,
    } else {
    }
    return
  }
  func.func @transform_0(%arg0: i32) -> (i32, i32) {
    %c0_i32 = arith.constant 0 : i32
    %c0_i32_0 = arith.constant 0 : i32
    return %arg0, %c0_i32 : i32, i32
  }
  func.func @transform_1(%arg0: i32) -> (i32, i32) {
    %c0_i32 = arith.constant 0 : i32
    %c0_i32_0 = arith.constant 0 : i32
    return %arg0, %c0_i32 : i32, i32
  }
  func.func @transform_2(%arg0: i32) -> (i32, i32, i32) {
    %c0_i32 = arith.constant 0 : i32
    %c0_i32_0 = arith.constant 0 : i32
    %c0_i32_1 = arith.constant 0 : i32
    %c0_i32_2 = arith.constant 0 : i32
    return %c0_i32, %c0_i32_0, %c0_i32_1 : i32, i32, i32
  }
}

</mosaic_0001>

<llo_original>
// kernel: tpu_custom_call.1
$region0: #{tpu_custom_call.1}
  #allocation0 [shape = 'u32[]', space=smem, size = 0x4, offset = 0x4, fixed_abs, tag = 'smem constant byte address 0x4 - core index']
  #allocation1 [shape = 'u32[144,128]{1,0:T(1,128)}', space=vmem, size = 0x12000, scoped, tag = 'internal scratch']
  %s0 = inlined_call_operand.hbm [shape: f32[16,128], index: 0, kind: input, shape index: {}]
  %s1 = inlined_call_operand.hbm [shape: f32[16,128], index: 1, kind: input, shape index: {}]
  %s2 = inlined_call_operand.hbm [shape: f32[1,8,128], index: 2, kind: output, shape index: {}]
  %s3 = sld [smem:[#allocation0]]
  $region38: #{tpu_custom_call.1} parent=0
    _
  %s5 = ssub.s32 1, %s3
  %s6 = scalar_select 0, %s5, %s3
  $region1: #{tpu_custom_call.1} parent=0
    #allocation2 [shape = 'u8[8192]{0}', space=vmem, size = 0x2000, scoped, tag = 'input window, operand 0, single buffered']
    #allocation3 [shape = 's32[1]{0}', space=sflag, size = 0x4, scoped, tag = 'scoped memory for tpu_custom_call.1']
    #allocation4 [shape = 's32[1]{0}', space=sflag, size = 0x4, scoped, tag = 'scoped memory for tpu_custom_call.1']
    #allocation5 [shape = 'u8[8192]{0}', space=vmem, size = 0x2000, scoped, tag = 'input window, operand 1, single buffered']
    #allocation6 [shape = 's32[1]{0}', space=sflag, size = 0x4, scoped, tag = 'scoped memory for tpu_custom_call.1']
    #allocation7 [shape = 'u8[4096]{0}', space=vmem, size = 0x1000, scoped, tag = 'output window, operand 0, single buffered']
    %7 = vsyncpa [#allocation3], 0
    %8 = vsyncpa [#allocation6], 0
    %9 = vsyncpa [#allocation4], 0
    // Predicated region
    $region2: #{tpu_custom_call.1} parent=1 // pred_check
      _
    $region3: #{tpu_custom_call.1} parent=1 // pred_check_branch
      %11 = sbr.rel (0) target = $region5
    $region4: #{tpu_custom_call.1} parent=1 // pred_region
      %s13 = ssub.s32 256, 256
      %14 = vsyncadd [#allocation3], %s13
      %s15 = sshll.u32 [#allocation2], 4
      %s16 = int_to_ptr.vmem [resolvable:$true] %s15
      %21 = dma.hbm_to_vmem [thread:$0]  %s0, 256, %s16, [#allocation3], 128, 128, 8
    $region5: #{tpu_custom_call.1} parent=1 // pred_fallthru
      _
    // Predicated region
    $region6: #{tpu_custom_call.1} parent=1 // pred_check
      _
    $region7: #{tpu_custom_call.1} parent=1 // pred_check_branch
      %23 = sbr.rel (0) target = $region9
    $region8: #{tpu_custom_call.1} parent=1 // pred_region
      %s25 = ssub.s32 256, 256
      %26 = vsyncadd [#allocation6], %s25
      %s27 = sshll.u32 [#allocation5], 4
      %s28 = int_to_ptr.vmem [resolvable:$true] %s27
      %33 = dma.hbm_to_vmem [thread:$0]  %s1, 256, %s28, [#allocation6], 128, 128, 8
    $region9: #{tpu_custom_call.1} parent=1 // pred_fallthru
      _
    // Predicated region
    $region10: #{tpu_custom_call.1} parent=1 // pred_check
      _
    $region11: #{tpu_custom_call.1} parent=1 // pred_check_branch
      %35 = sbr.rel (0) target = $region13
    $region12: #{tpu_custom_call.1} parent=1 // pred_region
      %36 = dma.done [#allocation3], 256
    $region13: #{tpu_custom_call.1} parent=1 // pred_fallthru
      _
    // Predicated region
    $region14: #{tpu_custom_call.1} parent=1 // pred_check
      _
    $region15: #{tpu_custom_call.1} parent=1 // pred_check_branch
      %38 = sbr.rel (0) target = $region17
    $region16: #{tpu_custom_call.1} parent=1 // pred_region
      %39 = dma.done [#allocation6], 256
    $region17: #{tpu_custom_call.1} parent=1 // pred_fallthru
      _
    %p40 = scmp.eq.s32.totalorder 0, 0
    // Predicated region
    $region18: #{tpu_custom_call.1} parent=1 // pred_check
      %p41 = pneg %p40
    $region19: #{tpu_custom_call.1} parent=1 // pred_check_branch
      %43 = sbr.rel (%p41) target = $region21
    $region20: #{tpu_custom_call.1} parent=1 // pred_region
      %44 = vst [vmem:[#allocation7] sm:$0xff] 0.0
    $region21: #{tpu_custom_call.1} parent=1 // pred_fallthru
      _
    %v45 = vld [vmem:[#allocation2] sm:$0xff]
    %v46 = vld [vmem:[#allocation2 + $0x8] sm:$0xff]
    %v47 = vld [vmem:[#allocation5] sm:$0xff]
    %v48 = vld [vmem:[#allocation5 + $0x8] sm:$0xff]
    %v49 = vsub.f32 %v45, %v47
    %v50 = vsub.f32 %v46, %v48
    %v51 = vmul.f32 %v49, %v49
    %v52 = vmul.f32 %v50, %v50
    %s53 = smul.u32 0, 16
    %s54 = sadd.s32 %s53, 16
    %p55 = scmp.gt.s32.totalorder %s54, 16
    %p56 = scmp.le.s32.totalorder %s54, 16
    // Predicated region
    $region22: #{tpu_custom_call.1} parent=1 // pred_check
      %p57 = pneg %p56
    $region23: #{tpu_custom_call.1} parent=1 // pred_check_branch
      %59 = sbr.rel (%p57) target = $region25
    $region24: #{tpu_custom_call.1} parent=1 // pred_region
      %v60 = vld [vmem:[#allocation7] sm:$0xff]
      %v61 = vadd.f32 %v51, %v52
      %v62 = vadd.f32 %v60, %v61
      %63 = vst [vmem:[#allocation7] sm:$0xff] %v62
    $region25: #{tpu_custom_call.1} parent=1 // pred_fallthru
      _
    // Predicated region
    $region26: #{tpu_custom_call.1} parent=1 // pred_check
      %p64 = pneg %p55
    $region27: #{tpu_custom_call.1} parent=1 // pred_check_branch
      %66 = sbr.rel (%p64) target = $region29
    $region28: #{tpu_custom_call.1} parent=1 // pred_region
      %v67 = vlaneseq
      %v68 = vshrl.u32 %v67, 7
      %v69 = vadd.s32 %v68, 8
      %v70 = vstv %s53
      %v71 = vadd.s32 %v70, %v68
      %v72 = vadd.s32 %v70, %v69
      %vm73 = vcmp.lt.s32.totalorder %v71, 16
      %vm74 = vcmp.lt.s32.totalorder %v72, 16
      %v75 = vsel %vm73, %v51, 0.0
      %v76 = vsel %vm74, %v52, 0.0
      %v77 = vld [vmem:[#allocation7] sm:$0xff]
      %v78 = vadd.f32 %v75, %v76
      %v79 = vadd.f32 %v77, %v78
      %80 = vst [vmem:[#allocation7] sm:$0xff] %v79
    $region29: #{tpu_custom_call.1} parent=1 // pred_fallthru
      _
    // Predicated region
    $region30: #{tpu_custom_call.1} parent=1 // pred_check
      _
    $region31: #{tpu_custom_call.1} parent=1 // pred_check_branch
      %82 = sbr.rel (0) target = $region33
    $region32: #{tpu_custom_call.1} parent=1 // pred_region
      %s84 = ssub.s32 128, 128
      %85 = vsyncadd [#allocation4], %s84
      %s87 = sshll.u32 [#allocation7], 4
      %s88 = int_to_ptr.vmem [resolvable:$true] %s87
      %90 = dma.vmem_to_hbm [thread:$0]  %s88, 128, %s2, [#allocation4]
    $region33: #{tpu_custom_call.1} parent=1 // pred_fallthru
      _
    // Predicated region
    $region34: #{tpu_custom_call.1} parent=1 // pred_check
      _
    $region35: #{tpu_custom_call.1} parent=1 // pred_check_branch
      %92 = sbr.rel (0) target = $region37
    $region36: #{tpu_custom_call.1} parent=1 // pred_region
      %93 = dma.done [#allocation4], 128
    $region37: #{tpu_custom_call.1} parent=1 // pred_fallthru
      _
    %94 = vsyncpa [#allocation3], 1
    %95 = vsyncpa [#allocation6], 1
    %96 = vsyncpa [#allocation4], 1

</llo_original>
